<compile_context>
chip_gen: v5e
topology: v5e:2x2
jax: 0.10.0
libtpu: 0.0.40
codegen_flags: <defaults>
</compile_context>

<pallas_src>
import functools

import jax
import jax.numpy as jnp
from jax.experimental import pallas as pl
from jax.experimental.pallas import tpu as pltpu

LANE = 128      # padded feature width (lane axis)
SUB = 8         # sublane quantum for batch padding
BT_MAX = 1024   # max rows per grid step (multiple of 8)

# Set to jnp.bfloat16 to halve weight DMA/VMEM and ~4x MXU throughput on v5e
# (accumulation stays f32 via preferred_element_type); needs ~1e-2 tolerance.
MXU_DTYPE = jnp.float32

# true layer sizes of the torch module
D_IN, H1, H2, H3, D_OUT = 2, 50, 128, 50, 2


def _elu(x):
    # torch.nn.ELU, alpha=1.0.  exp only sees a clamped (<=0) argument, so the
    # untaken positive branch cannot overflow.
    # TODO(synk): switch to jnp.expm1 once its Mosaic lowering is confirmed,
    # for better precision at tiny |x| (harmless at the current tolerance).
    return jnp.where(x > 0, x, jnp.exp(jnp.minimum(x, 0.0)) - 1.0)


def odefunc_kernel(y_ref, w_ref, b_ref, o_ref):
    """y_ref: (BT, 2)  w_ref: (4, 128, 128)  b_ref: (4, 128)  o_ref: (BT, 2)."""
    y = y_ref[...]                                       # (BT, 2) f32

    # ---- Layer 1: Linear(2, 50) + Tanh on the VPU (only 2 input features).
    # Slice the two real weight rows directly off the ref: ~2 narrow vector
    # loads instead of reading the full (128,128) tile (64 vregs).
    h = jnp.tanh(y[:, 0:1] * w_ref[0, 0:1, :]
                 + y[:, 1:2] * w_ref[0, 1:2, :]
                 + b_ref[0:1, :])                        # (BT, 128), lanes >= 50 are 0
    h = h.astype(w_ref.dtype)

    # ---- Layer 2: Linear(50, 128) + ELU (MXU).
    h = _elu(jnp.dot(h, w_ref[1], preferred_element_type=jnp.float32)
             + b_ref[1:2, :])
    h = h.astype(w_ref.dtype)

    # ---- Layer 3: Linear(128, 50) + Tanh (MXU).
    h = jnp.tanh(jnp.dot(h, w_ref[2], preferred_element_type=jnp.float32)
                 + b_ref[2:3, :])
    h = h.astype(w_ref.dtype)

    # ---- Layer 4: Linear(50, 2) (MXU; only the first 2 output lanes are real).
    out = (jnp.dot(h, w_ref[3], preferred_element_type=jnp.float32)
           + b_ref[3:4, :])                              # (BT, 128)
    o_ref[...] = out[:, :D_OUT].astype(o_ref.dtype)      # store only the 2 real lanes


def _pad2d(x, rows, cols):
    r, c = x.shape
    return jnp.pad(x, ((0, rows - r), (0, cols - c)))


def _round_up(x, m):
    return ((x + m - 1) // m) * m


def prepare_params(params):
    """One-time preprocessing (per solve, NOT per ODE step): pad weights to
    (128,128), biases to (128,), and stack them into (4,128,128) / (4,128)."""
    (w1, b1), (w2, b2), (w3, b3), (w4, b4) = params
    w_stack = jnp.stack([_pad2d(w.astype(jnp.float32), LANE, LANE)
                         for w in (w1, w2, w3, w4)]).astype(MXU_DTYPE)
    b_stack = jnp.stack([jnp.pad(b.astype(jnp.float32), (0, LANE - b.shape[0]))
                         for b in (b1, b2, b3, b4)])
    return w_stack, b_stack


@jax.jit
def odefunc_forward(t, y, w_stack, b_stack):
    """Per-ODE-step call.  y: (B, 2) float32 -> (B, 2) float32.
    t is ignored (matches the torch forward).  w_stack/b_stack come from
    prepare_params() and are passed unchanged every step."""
    del t
    B = y.shape[0]

    # Balanced batch tiling:
    #  * at least 2 (even) grid steps so v7x's two TensorCores both get work,
    #  * tile <= BT_MAX, balanced across tiles so a batch just over BT_MAX
    #    doesn't pad ~2x,
    #  * bt a multiple of the 8-row sublane quantum.
    n_tiles = _round_up(max(2, pl.cdiv(B, BT_MAX)), 2)
    bt = _round_up(pl.cdiv(B, n_tiles), SUB)
    b_pad = n_tiles * bt

    y_p = jnp.pad(y.astype(jnp.float32), ((0, b_pad - B), (0, 0)))  # (b_pad, 2)

    out_p = pl.pallas_call(
        odefunc_kernel,
        out_shape=jax.ShapeDtypeStruct((b_pad, D_OUT), jnp.float32),
        grid_spec=pltpu.PrefetchScalarGridSpec(
            num_scalar_prefetch=0,
            grid=(n_tiles,),
            in_specs=[
                pl.BlockSpec((bt, D_IN), lambda i: (i, 0)),           # y tile
                pl.BlockSpec((4, LANE, LANE), lambda i: (0, 0, 0)),   # stacked weights
                pl.BlockSpec((4, LANE), lambda i: (0, 0)),            # stacked biases
            ],
            out_specs=pl.BlockSpec((bt, D_OUT), lambda i: (i, 0)),
        ),
        compiler_params=pltpu.CompilerParams(
            dimension_semantics=("parallel",)),
    )(y_p, w_stack, b_stack)

    return out_p[:B, :]


def init_params(key):
    """Deterministic init matching torch: weight ~ N(0, 0.1), bias = 0.
    Weights stored as (in_features, out_features) so the kernel does y @ W."""
    ks = jax.random.split(key, 4)
    shapes = [(D_IN, H1), (H1, H2), (H2, H3), (H3, D_OUT)]
    params = []
    for k, (fi, fo) in zip(ks, shapes):
        w = 0.1 * jax.random.normal(k, (fi, fo), dtype=jnp.float32)
        b = jnp.zeros((fo,), dtype=jnp.float32)
        params.append((w, b))
    return tuple(params)


def _reference(y, params):
    (w1, b1), (w2, b2), (w3, b3), (w4, b4) = params
    h = jnp.tanh(y @ w1 + b1)
    h = _elu(h @ w2 + b2)
    h = jnp.tanh(h @ w3 + b3)
    return h @ w4 + b4


if __name__ == "__main__":
    key = jax.random.PRNGKey(0)
    k_p, k_y = jax.random.split(key)
    params = init_params(k_p)

    # One-time pad/stack (outside the ODE step, per perf review).
    w_stack, b_stack = prepare_params(params)
    w_stack = jax.block_until_ready(w_stack)

    B = 2
    y = jax.random.normal(k_y, (B, D_IN), dtype=jnp.float32)
    t = jnp.float32(0.0)  # unused, mirrors forward(t, y)

    out = odefunc_forward(t, y, w_stack, b_stack)
    out = jax.block_until_ready(out)

    ref = _reference(y, params)
    assert out.shape == (B, D_OUT)
    assert jnp.allclose(out, ref, atol=1e-5, rtol=1e-5)

    print("KERNEL_OK")
</pallas_src>

<mosaic_0001>
module attributes {stable_mosaic.version = 11 : i64} {
  func.func @odefunc_kernel(%arg0: i32, %arg1: memref<8x2xf32, #tpu.memory_space<vmem>>, %arg2: memref<4x128x128xf32, #tpu.memory_space<vmem>>, %arg3: memref<4x128xf32, #tpu.memory_space<vmem>>, %arg4: memref<8x2xf32, #tpu.memory_space<vmem>>) attributes {dimension_semantics = [#tpu.dimension_semantics<parallel>], iteration_bounds = array<i64: 2>, scalar_prefetch = 0 : i64, scratch_operands = 0 : i64, tpu.core_type = #tpu.core_type<tc>, window_params = [{transform_indices = @transform_0, window_bounds = array<i64: 8, 2>}, {pipeline_mode = #tpu.pipeline_mode<synchronous>, transform_indices = @transform_1, window_bounds = array<i64: 4, 128, 128>}, {pipeline_mode = #tpu.pipeline_mode<synchronous>, transform_indices = @transform_2, window_bounds = array<i64: 4, 128>}, {transform_indices = @transform_3, window_bounds = array<i64: 8, 2>}]} {
    %c0 = arith.constant 0 : index
    %c0_0 = arith.constant 0 : index
    %0 = vector.load %arg1[%c0, %c0_0] : memref<8x2xf32, #tpu.memory_space<vmem>>, vector<8x2xf32>
    %1 = vector.extract_strided_slice %0 {offsets = [0, 0], sizes = [8, 1], strides = [1, 1]} : vector<8x2xf32> to vector<8x1xf32>
    %c0_1 = arith.constant 0 : index
    %c0_2 = arith.constant 0 : index
    %c0_3 = arith.constant 0 : index
    %2 = vector.load %arg2[%c0_1, %c0_2, %c0_3] : memref<4x128x128xf32, #tpu.memory_space<vmem>>, vector<1x1x128xf32>
    %3 = vector.shape_cast %2 : vector<1x1x128xf32> to vector<1x128xf32>
    %4 = vector.broadcast %1 : vector<8x1xf32> to vector<8x128xf32>
    %5 = vector.broadcast %3 : vector<1x128xf32> to vector<8x128xf32>
    %6 = arith.mulf %4, %5 : vector<8x128xf32>
    %7 = vector.extract_strided_slice %0 {offsets = [0, 1], sizes = [8, 1], strides = [1, 1]} : vector<8x2xf32> to vector<8x1xf32>
    %c0_4 = arith.constant 0 : index
    %c1 = arith.constant 1 : index
    %c0_5 = arith.constant 0 : index
    %8 = vector.load %arg2[%c0_4, %c1, %c0_5] : memref<4x128x128xf32, #tpu.memory_space<vmem>>, vector<1x1x128xf32>
    %9 = vector.shape_cast %8 : vector<1x1x128xf32> to vector<1x128xf32>
    %10 = vector.broadcast %7 : vector<8x1xf32> to vector<8x128xf32>
    %11 = vector.broadcast %9 : vector<1x128xf32> to vector<8x128xf32>
    %12 = arith.mulf %10, %11 : vector<8x128xf32>
    %13 = arith.addf %6, %12 : vector<8x128xf32>
    %c0_6 = arith.constant 0 : index
    %c0_7 = arith.constant 0 : index
    %14 = vector.load %arg3[%c0_6, %c0_7] : memref<4x128xf32, #tpu.memory_space<vmem>>, vector<1x128xf32>
    %15 = vector.broadcast %14 : vector<1x128xf32> to vector<8x128xf32>
    %16 = arith.addf %13, %15 : vector<8x128xf32>
    %17 = math.tanh %16 : vector<8x128xf32>
    %c1_8 = arith.constant 1 : index
    %c0_9 = arith.constant 0 : index
    %c0_10 = arith.constant 0 : index
    %18 = vector.load %arg2[%c1_8, %c0_9, %c0_10] : memref<4x128x128xf32, #tpu.memory_space<vmem>>, vector<1x128x128xf32>
    %19 = vector.shape_cast %18 : vector<1x128x128xf32> to vector<128x128xf32>
    %cst = arith.constant dense<0.000000e+00> : vector<8x128xf32>
    %20 = tpu.matmul %17, %19, %cst {dimension_numbers = #tpu.dot_dimension_numbers<[1], [0], [0], [1], [0, 0, 1, 1], [], []>} : vector<8x128xf32>, vector<128x128xf32>, vector<8x128xf32> -> vector<8x128xf32>
    %c1_11 = arith.constant 1 : index
    %c0_12 = arith.constant 0 : index
    %21 = vector.load %arg3[%c1_11, %c0_12] : memref<4x128xf32, #tpu.memory_space<vmem>>, vector<1x128xf32>
    %22 = vector.broadcast %21 : vector<1x128xf32> to vector<8x128xf32>
    %23 = arith.addf %20, %22 : vector<8x128xf32>
    %cst_13 = arith.constant 0.000000e+00 : f32
    %24 = vector.broadcast %cst_13 : f32 to vector<8x128xf32>
    %25 = arith.cmpf ogt, %23, %24 : vector<8x128xf32>
    %cst_14 = arith.constant 0.000000e+00 : f32
    %26 = vector.broadcast %cst_14 : f32 to vector<8x128xf32>
    %27 = arith.minimumf %23, %26 : vector<8x128xf32>
    %28 = math.exp %27 : vector<8x128xf32>
    %cst_15 = arith.constant 1.000000e+00 : f32
    %29 = vector.broadcast %cst_15 : f32 to vector<8x128xf32>
    %30 = arith.subf %28, %29 : vector<8x128xf32>
    %31 = arith.select %25, %23, %30 : vector<8x128xi1>, vector<8x128xf32>
    %c2 = arith.constant 2 : index
    %c0_16 = arith.constant 0 : index
    %c0_17 = arith.constant 0 : index
    %32 = vector.load %arg2[%c2, %c0_16, %c0_17] : memref<4x128x128xf32, #tpu.memory_space<vmem>>, vector<1x128x128xf32>
    %33 = vector.shape_cast %32 : vector<1x128x128xf32> to vector<128x128xf32>
    %cst_18 = arith.constant dense<0.000000e+00> : vector<8x128xf32>
    %34 = tpu.matmul %31, %33, %cst_18 {dimension_numbers = #tpu.dot_dimension_numbers<[1], [0], [0], [1], [0, 0, 1, 1], [], []>} : vector<8x128xf32>, vector<128x128xf32>, vector<8x128xf32> -> vector<8x128xf32>
    %c2_19 = arith.constant 2 : index
    %c0_20 = arith.constant 0 : index
    %35 = vector.load %arg3[%c2_19, %c0_20] : memref<4x128xf32, #tpu.memory_space<vmem>>, vector<1x128xf32>
    %36 = vector.broadcast %35 : vector<1x128xf32> to vector<8x128xf32>
    %37 = arith.addf %34, %36 : vector<8x128xf32>
    %38 = math.tanh %37 : vector<8x128xf32>
    %c3 = arith.constant 3 : index
    %c0_21 = arith.constant 0 : index
    %c0_22 = arith.constant 0 : index
    %39 = vector.load %arg2[%c3, %c0_21, %c0_22] : memref<4x128x128xf32, #tpu.memory_space<vmem>>, vector<1x128x128xf32>
    %40 = vector.shape_cast %39 : vector<1x128x128xf32> to vector<128x128xf32>
    %cst_23 = arith.constant dense<0.000000e+00> : vector<8x128xf32>
    %41 = tpu.matmul %38, %40, %cst_23 {dimension_numbers = #tpu.dot_dimension_numbers<[1], [0], [0], [1], [0, 0, 1, 1], [], []>} : vector<8x128xf32>, vector<128x128xf32>, vector<8x128xf32> -> vector<8x128xf32>
    %c3_24 = arith.constant 3 : index
    %c0_25 = arith.constant 0 : index
    %42 = vector.load %arg3[%c3_24, %c0_25] : memref<4x128xf32, #tpu.memory_space<vmem>>, vector<1x128xf32>
    %43 = vector.broadcast %42 : vector<1x128xf32> to vector<8x128xf32>
    %44 = arith.addf %41, %43 : vector<8x128xf32>
    %45 = vector.extract_strided_slice %44 {offsets = [0, 0], sizes = [8, 2], strides = [1, 1]} : vector<8x128xf32> to vector<8x2xf32>
    %c0_26 = arith.constant 0 : index
    %c0_27 = arith.constant 0 : index
    %46 = vector.load %arg4[%c0_26, %c0_27] : memref<8x2xf32, #tpu.memory_space<vmem>>, vector<8x2xf32>
    tpu.vector_store %arg4[%c0_26, %c0_27], %45 {strides = array<i32>} : memref<8x2xf32, #tpu.memory_space<vmem>>, vector<8x2xf32>,
    return
  }
  func.func @transform_0(%arg0: i32) -> (i32, i32) {
    %c0_i32 = arith.constant 0 : i32
    %c0_i32_0 = arith.constant 0 : i32
    return %arg0, %c0_i32 : i32, i32
  }
  func.func @transform_1(%arg0: i32) -> (i32, i32, i32) {
    %c0_i32 = arith.constant 0 : i32
    %c0_i32_0 = arith.constant 0 : i32
    %c0_i32_1 = arith.constant 0 : i32
    %c0_i32_2 = arith.constant 0 : i32
    return %c0_i32, %c0_i32_0, %c0_i32_1 : i32, i32, i32
  }
  func.func @transform_2(%arg0: i32) -> (i32, i32) {
    %c0_i32 = arith.constant 0 : i32
    %c0_i32_0 = arith.constant 0 : i32
    %c0_i32_1 = arith.constant 0 : i32
    return %c0_i32, %c0_i32_0 : i32, i32
  }
  func.func @transform_3(%arg0: i32) -> (i32, i32) {
    %c0_i32 = arith.constant 0 : i32
    %c0_i32_0 = arith.constant 0 : i32
    return %arg0, %c0_i32 : i32, i32
  }
}

</mosaic_0001>

<llo_original>
// kernel: odefunc_forward.1
$region0: #{odefunc_forward.1}
  #allocation0 [shape = 'u32[]', space=smem, size = 0x4, offset = 0x4, fixed_abs, tag = 'smem constant byte address 0x4 - core index']
  #allocation1 [shape = 'u32[72,128]{1,0:T(1,128)}', space=vmem, size = 0x9000, scoped, tag = 'internal scratch']
  %s0 = inlined_call_operand.vmem [shape: f32[16,2], index: 0, kind: input, shape index: {}]
  %s1 = inlined_call_operand.hbm [shape: f32[4,128,128], index: 1, kind: input, shape index: {}]
  %s2 = inlined_call_operand.vmem [shape: f32[4,128], index: 2, kind: input, shape index: {}]
  %s3 = inlined_call_operand.vmem [shape: f32[16,2], index: 3, kind: output, shape index: {}]
  %s4 = sld [smem:[#allocation0]]
  $region49: #{odefunc_forward.1} parent=0
    _
  %s6 = ssub.s32 1, %s4
  %s7 = scalar_select 0, %s6, %s4
  $region1: #{odefunc_forward.1} parent=0
    #allocation2 [shape = 'u8[262144]{0}', space=vmem, size = 0x40000, scoped, tag = 'input window, operand 1, single buffered']
    #allocation3 [shape = 's32[2]{0}', space=sflag, size = 0x8, scoped, tag = 'scoped memory for odefunc_forward.1']
    %8 = vsyncpa [#allocation3], 0
    loop: start=0, step=1, limit=4
    $region2: #{odefunc_forward.1} parent=1 // loop_pre_header
      _
    $region3: #{odefunc_forward.1} parent=1 // loop_header
      %s10 = sphi 0, %s14
      %p11 = scmp.ge.s32.totalorder %s10, 4
      %s20 = sphi 0, %s22
      %s23 = sphi 0, %s20
      %s24 = sphi 0, %s23
      %s40 = sphi 0, %s24
      %s44 = sphi 0, %s44
      %s46 = sphi 0, %s44
      %s47 = sphi 0, %s46
      %s61 = sphi 0, %s47
      %s65 = sphi 0, %s65
      %s67 = sphi 0, %s65
      %s68 = sphi 0, %s67
      %s82 = sphi 0, %s68
      %s88 = sphi 0, %s90
      %s91 = sphi 0, %s88
      %s92 = sphi 0, %s91
      %s108 = sphi 0, %s92
    $region4: #{odefunc_forward.1} parent=1 // loop_header_branch
      %13 = sbr.rel (%p11) target = $region8
    $region5: #{odefunc_forward.1} parent=1 // loop_body
      %s15 = ssub.s32 %s10, 1
      %s16 = ssub.s32 %s10, 2
      %s17 = sadd.s32 %s10, 1
      %s18 = ssub.s32 %s10, %s17
      %p19 = scmp.eq.s32.totalorder %s18, 0
      %s21 = sadd.s32 %s20, 1
      %s22 = scalar_select %p19, %s20, %s21
      %p25 = pneg %p19
      %p26 = scmp.eq.s32.totalorder %s10, 1
      %p27 = por %p25, %p26
      %p28 = scmp.ne.s32.totalorder %s20, %s23
      %p29 = scmp.eq.s32.totalorder %s10, 0
      %p30 = por %p28, %p29
      %p31 = scmp.ne.s32.totalorder %s20, %s23
      %p32 = scmp.eq.s32.totalorder %s15, 1
      %p33 = por %p31, %p32
      %p34 = scmp.ne.s32.totalorder %s23, %s24
      %p35 = scmp.eq.s32.totalorder %s15, 0
      %p36 = por %p34, %p35
      %p37 = scmp.ne.s32.totalorder %s23, %s24
      %p38 = scmp.eq.s32.totalorder %s16, 1
      %p39 = por %p37, %p38
      %p41 = scmp.ne.s32.totalorder %s24, %s40
      %p42 = scmp.eq.s32.totalorder %s16, 0
      %p43 = por %p41, %p42
      %s45 = sadd.s32 %s44, 1
      %p48 = scmp.eq.s32.totalorder %s10, 1
      %p49 = scmp.ne.s32.totalorder %s44, %s46
      %p50 = scmp.eq.s32.totalorder %s10, 0
      %p51 = por %p49, %p50
      %p52 = scmp.ne.s32.totalorder %s44, %s46
      %p53 = scmp.eq.s32.totalorder %s15, 1
      %p54 = por %p52, %p53
      %p55 = scmp.ne.s32.totalorder %s46, %s47
      %p56 = scmp.eq.s32.totalorder %s15, 0
      %p57 = por %p55, %p56
      %p58 = scmp.ne.s32.totalorder %s46, %s47
      %p59 = scmp.eq.s32.totalorder %s16, 1
      %p60 = por %p58, %p59
      %p62 = scmp.ne.s32.totalorder %s47, %s61
      %p63 = scmp.eq.s32.totalorder %s16, 0
      %p64 = por %p62, %p63
      %s66 = sadd.s32 %s65, 1
      %p69 = scmp.eq.s32.totalorder %s10, 1
      %p70 = scmp.ne.s32.totalorder %s65, %s67
      %p71 = scmp.eq.s32.totalorder %s10, 0
      %p72 = por %p70, %p71
      %p73 = scmp.ne.s32.totalorder %s65, %s67
      %p74 = scmp.eq.s32.totalorder %s15, 1
      %p75 = por %p73, %p74
      %p76 = scmp.ne.s32.totalorder %s67, %s68
      %p77 = scmp.eq.s32.totalorder %s15, 0
      %p78 = por %p76, %p77
      %p79 = scmp.ne.s32.totalorder %s67, %s68
      %p80 = scmp.eq.s32.totalorder %s16, 1
      %p81 = por %p79, %p80
      %p83 = scmp.ne.s32.totalorder %s68, %s82
      %p84 = scmp.eq.s32.totalorder %s16, 0
      %p85 = por %p83, %p84
      %s86 = ssub.s32 %s10, %s17
      %p87 = scmp.eq.s32.totalorder %s86, 0
      %s89 = sadd.s32 %s88, 1
      %s90 = scalar_select %p87, %s88, %s89
      %p93 = pneg %p87
      %p94 = scmp.eq.s32.totalorder %s10, 1
      %p95 = por %p93, %p94
      %p96 = scmp.ne.s32.totalorder %s88, %s91
      %p97 = scmp.eq.s32.totalorder %s10, 0
      %p98 = por %p96, %p97
      %p99 = scmp.ne.s32.totalorder %s88, %s91
      %p100 = scmp.eq.s32.totalorder %s15, 1
      %p101 = por %p99, %p100
      %p102 = scmp.ne.s32.totalorder %s91, %s92
      %p103 = scmp.eq.s32.totalorder %s15, 0
      %p104 = por %p102, %p103
      %p105 = scmp.ne.s32.totalorder %s91, %s92
      %p106 = scmp.eq.s32.totalorder %s16, 1
      %p107 = por %p105, %p106
      %p109 = scmp.ne.s32.totalorder %s92, %s108
      %p110 = scmp.eq.s32.totalorder %s16, 0
      %p111 = por %p109, %p110
      %p112 = scmp.le.s32.totalorder 1, %s10
      %p113 = scmp.lt.s32.totalorder %s10, 3
      %p114 = pnand %p112, %p113
      %p115 = pneg %p114
      // Predicated region
      $region9: #{odefunc_forward.1} parent=5 // pred_check
        _
      $region10: #{odefunc_forward.1} parent=5 // pred_check_branch
        %117 = sbr.rel (%p114) target = $region12
      $region11: #{odefunc_forward.1} parent=5 // pred_region
        %s118 = ssub.s32 %s10, 1
        // Predicated region
        $region13: #{odefunc_forward.1} parent=11 // pred_check
          %p119 = pneg %p57
        $region14: #{odefunc_forward.1} parent=11 // pred_check_branch
          %121 = sbr.rel (%p119) target = $region16
        $region15: #{odefunc_forward.1} parent=11 // pred_region
          %123 = vsyncadd [#allocation3], 0
          %s124 = sshll.u32 %s1, 4
          %s125 = int_to_ptr.hbm [resolvable:$true] %s124
          %s126 = sshll.u32 [#allocation2], 4
          %s127 = int_to_ptr.vmem [resolvable:$true] %s126
          %132 = dma.hbm_to_vmem [thread:$0]  %s125, 8192, %s127, [#allocation3], 128, 128, 8
        $region16: #{odefunc_forward.1} parent=11 // pred_fallthru
          _
        // Predicated region
        $region17: #{odefunc_forward.1} parent=11 // pred_check
          %p133 = pneg %p78
        $region18: #{odefunc_forward.1} parent=11 // pred_check_branch
          %135 = sbr.rel (%p133) target = $region20
        $region19: #{odefunc_forward.1} parent=11 // pred_region
          _
        $region20: #{odefunc_forward.1} parent=11 // pred_fallthru
          _
      $region12: #{odefunc_forward.1} parent=5 // pred_fallthru
        _
      %p136 = scmp.lt.s32.totalorder %s10, 2
      // Predicated region
      $region21: #{odefunc_forward.1} parent=5 // pred_check
        %p137 = pneg %p136
      $region22: #{odefunc_forward.1} parent=5 // pred_check_branch
        %139 = sbr.rel (%p137) target = $region24
      $region23: #{odefunc_forward.1} parent=5 // pred_region
        // Predicated region
        $region25: #{odefunc_forward.1} parent=23 // pred_check
          %p140 = pneg %p30
        $region26: #{odefunc_forward.1} parent=23 // pred_check_branch
          %142 = sbr.rel (%p140) target = $region28
        $region27: #{odefunc_forward.1} parent=23 // pred_region
          %p143 = scmp.lt.s32.totalorder %s10, 1
          %s144 = scalar_select %p143, %s10, 1
          %s145 = smul.addr %s144, 8
          %s146 = scalar_lea.vmem %s0, %s145
        $region28: #{odefunc_forward.1} parent=23 // pred_fallthru
          _
      $region24: #{odefunc_forward.1} parent=5 // pred_fallthru
        _
      %p147 = scmp.le.s32.totalorder 1, %s10
      %p148 = scmp.lt.s32.totalorder %s10, 3
      %p149 = pnand %p147, %p148
      %p150 = pneg %p149
      // Predicated region
      $region29: #{odefunc_forward.1} parent=5 // pred_check
        _
      $region30: #{odefunc_forward.1} parent=5 // pred_check_branch
        %152 = sbr.rel (%p149) target = $region32
      $region31: #{odefunc_forward.1} parent=5 // pred_region
        %s153 = ssub.s32 %s10, 1
        // Predicated region
        $region33: #{odefunc_forward.1} parent=31 // pred_check
          %p154 = pneg %p57
        $region34: #{odefunc_forward.1} parent=31 // pred_check_branch
          %156 = sbr.rel (%p154) target = $region36
        $region35: #{odefunc_forward.1} parent=31 // pred_region
          %158 = dma.done [#allocation3], 8192
        $region36: #{odefunc_forward.1} parent=31 // pred_fallthru
          _
        %p159 = scmp.lt.s32.totalorder %s15, 1
        %s160 = scalar_select %p159, %s15, 1
        %s161 = smul.addr %s160, 8
        %s162 = scalar_lea.vmem %s0, %s161
        %p163 = pneg %p36
        %p164 = pneg %p33
        %p165 = pneg %p57
        %p166 = pneg %p54
        %p167 = pneg %p78
        %p168 = pneg %p75
        %p169 = pneg %p104
        %p170 = pneg %p101
        %p171 = scmp.lt.s32.totalorder %s15, 1
        %s172 = scalar_select %p171, %s15, 1
        %s173 = smul.addr %s172, 8
        %s174 = scalar_lea.vmem %s3, %s173
        %p175 = scmp.lt.s32.totalorder %s15, 1
        %s176 = scalar_select %p175, %s15, 1
        %s177 = smul.addr %s176, 8
        %s178 = scalar_lea.vmem %s0, %s177
        %p179 = scmp.lt.s32.totalorder %s15, 1
        %s180 = scalar_select %p179, %s15, 1
        %s181 = smul.addr %s180, 8
        %s182 = scalar_lea.vmem %s3, %s181
        %v183 = vld [vmem:[%s178] sm:$0xff]
        %v184 = vld [vmem:[#allocation2] sm:$0x1]
        %186 = vset.pattern.permute.xlu0 0
        %187 = vperm.xlu0 %186, %v183
        %v188 = vpop.permute.xlu0 %187
        %v190 = vperm.slane %v184, 0
        %v191 = vmul.f32 %v188, %v190
        %v192 = vld [vmem:[#allocation2 + $0x1] sm:$0x1]
        %193 = vset.pattern.permute.xlu0 1
        %194 = vperm.xlu0 %193, %v183
        %v195 = vpop.permute.xlu0 %194
        %v197 = vperm.slane %v192, 0
        %v198 = vmul.f32 %v195, %v197
        %v199 = vadd.f32 %v191, %v198
        %v200 = vld [vmem:[%s2] sm:$0x1]
        %v201 = vperm.slane %v200, 0
        %v202 = vadd.f32 %v199, %v201
        %v203 = vtanh.pop %v202
        %s204 = scalar_lea.vmem [#allocation2], 128
        %v205 = vld [vmem:[%s204] sm:$0xff]
        %v206 = vld [vmem:[%s204 + $0x8] sm:$0xff]
        %v207 = vld [vmem:[%s204 + $0x10] sm:$0xff]
        %v208 = vld [vmem:[%s204 + $0x18] sm:$0xff]
        %v209 = vld [vmem:[%s204 + $0x20] sm:$0xff]
        %v210 = vld [vmem:[%s204 + $0x28] sm:$0xff]
        %v211 = vld [vmem:[%s204 + $0x30] sm:$0xff]
        %v212 = vld [vmem:[%s204 + $0x38] sm:$0xff]
        %v213 = vld [vmem:[%s204 + $0x40] sm:$0xff]
        %v214 = vld [vmem:[%s204 + $0x48] sm:$0xff]
        %v215 = vld [vmem:[%s204 + $0x50] sm:$0xff]
        %v216 = vld [vmem:[%s204 + $0x58] sm:$0xff]
        %v217 = vld [vmem:[%s204 + $0x60] sm:$0xff]
        %v218 = vld [vmem:[%s204 + $0x68] sm:$0xff]
        %v219 = vld [vmem:[%s204 + $0x70] sm:$0xff]
        %v220 = vld [vmem:[%s204 + $0x78] sm:$0xff]
        %v221 = vld [vmem:[%s2 + $0x1] sm:$0x1]
        %v222 = vperm.slane %v221, 0
        %223 = vmatpush.msra.mxu0 %v220
        %224 = vmatpush.msra.mxu0 %v219
        %225 = vmatpush.msra.mxu0 %v218
        %226 = vmatpush.msra.mxu0 %v217
        %227 = vmatpush.msra.mxu0 %v216
        %228 = vmatpush.msra.mxu0 %v215
        %229 = vmatpush.msra.mxu0 %v214
        %230 = vmatpush.msra.mxu0 %v213
        %231 = vmatpush.msra.mxu0 %v212
        %232 = vmatpush.msra.mxu0 %v211
        %233 = vmatpush.msra.mxu0 %v210
        %234 = vmatpush.msra.mxu0 %v209
        %235 = vmatpush.msra.mxu0 %v208
        %236 = vmatpush.msra.mxu0 %v207
        %237 = vmatpush.msra.mxu0 %v206
        %238 = vmatpush.msra.mxu0 %v205
        %239 = vmatmul.f32.gmra.mxu0 %v203
        %v240 = vpop.f32.mrf.mxu0
        %v241 = vadd.f32 %v222, %v240
        %242 = vdwg.mxu0
        %vm243 = vcmp.gt.f32.partialorder %v241, 0.0
        %v244 = vmin.f32 %v241, 0.0
        %v245 = vmul.f32 %v244, 1.442695
        %v246 = vpow.pop %v245
        %v247 = vsub.f32 %v246, 1.0
        %v248 = vsel %vm243, %v241, %v247
        %s249 = scalar_lea.vmem [#allocation2], 256
        %v250 = vld [vmem:[%s249] sm:$0xff]
        %v251 = vld [vmem:[%s249 + $0x8] sm:$0xff]
        %v252 = vld [vmem:[%s249 + $0x10] sm:$0xff]
        %v253 = vld [vmem:[%s249 + $0x18] sm:$0xff]
        %v254 = vld [vmem:[%s249 + $0x20] sm:$0xff]
        %v255 = vld [vmem:[%s249 + $0x28] sm:$0xff]
        %v256 = vld [vmem:[%s249 + $0x30] sm:$0xff]
        %v257 = vld [vmem:[%s249 + $0x38] sm:$0xff]
        %v258 = vld [vmem:[%s249 + $0x40] sm:$0xff]
        %v259 = vld [vmem:[%s249 + $0x48] sm:$0xff]
        %v260 = vld [vmem:[%s249 + $0x50] sm:$0xff]
        %v261 = vld [vmem:[%s249 + $0x58] sm:$0xff]
        %v262 = vld [vmem:[%s249 + $0x60] sm:$0xff]
        %v263 = vld [vmem:[%s249 + $0x68] sm:$0xff]
        %v264 = vld [vmem:[%s249 + $0x70] sm:$0xff]
        %v265 = vld [vmem:[%s249 + $0x78] sm:$0xff]
        %v266 = vld [vmem:[%s2 + $0x2] sm:$0x1]
        %v267 = vperm.slane %v266, 0
        %268 = vmatpush.msra.mxu0 %v265
        %269 = vmatpush.msra.mxu0 %v264
        %270 = vmatpush.msra.mxu0 %v263
        %271 = vmatpush.msra.mxu0 %v262
        %272 = vmatpush.msra.mxu0 %v261
        %273 = vmatpush.msra.mxu0 %v260
        %274 = vmatpush.msra.mxu0 %v259
        %275 = vmatpush.msra.mxu0 %v258
        %276 = vmatpush.msra.mxu0 %v257
        %277 = vmatpush.msra.mxu0 %v256
        %278 = vmatpush.msra.mxu0 %v255
        %279 = vmatpush.msra.mxu0 %v254
        %280 = vmatpush.msra.mxu0 %v253
        %281 = vmatpush.msra.mxu0 %v252
        %282 = vmatpush.msra.mxu0 %v251
        %283 = vmatpush.msra.mxu0 %v250
        %284 = vmatmul.f32.gmra.mxu0 %v248
        %v285 = vpop.f32.mrf.mxu0
        %v286 = vadd.f32 %v267, %v285
        %287 = vdwg.mxu0
        %v288 = vtanh.pop %v286
        %s289 = scalar_lea.vmem [#allocation2], 384
        %v290 = vld [vmem:[%s289] sm:$0xff]
        %v291 = vld [vmem:[%s289 + $0x8] sm:$0xff]
        %v292 = vld [vmem:[%s289 + $0x10] sm:$0xff]
        %v293 = vld [vmem:[%s289 + $0x18] sm:$0xff]
        %v294 = vld [vmem:[%s289 + $0x20] sm:$0xff]
        %v295 = vld [vmem:[%s289 + $0x28] sm:$0xff]
        %v296 = vld [vmem:[%s289 + $0x30] sm:$0xff]
        %v297 = vld [vmem:[%s289 + $0x38] sm:$0xff]
        %v298 = vld [vmem:[%s289 + $0x40] sm:$0xff]
        %v299 = vld [vmem:[%s289 + $0x48] sm:$0xff]
        %v300 = vld [vmem:[%s289 + $0x50] sm:$0xff]
        %v301 = vld [vmem:[%s289 + $0x58] sm:$0xff]
        %v302 = vld [vmem:[%s289 + $0x60] sm:$0xff]
        %v303 = vld [vmem:[%s289 + $0x68] sm:$0xff]
        %v304 = vld [vmem:[%s289 + $0x70] sm:$0xff]
        %v305 = vld [vmem:[%s289 + $0x78] sm:$0xff]
        %v306 = vld [vmem:[%s2 + $0x3] sm:$0x1]
        %v307 = vperm.slane %v306, 0
        %308 = vmatpush.msra.mxu0 %v305
        %309 = vmatpush.msra.mxu0 %v304
        %310 = vmatpush.msra.mxu0 %v303
        %311 = vmatpush.msra.mxu0 %v302
        %312 = vmatpush.msra.mxu0 %v301
        %313 = vmatpush.msra.mxu0 %v300
        %314 = vmatpush.msra.mxu0 %v299
        %315 = vmatpush.msra.mxu0 %v298
        %316 = vmatpush.msra.mxu0 %v297
        %317 = vmatpush.msra.mxu0 %v296
        %318 = vmatpush.msra.mxu0 %v295
        %319 = vmatpush.msra.mxu0 %v294
        %320 = vmatpush.msra.mxu0 %v293
        %321 = vmatpush.msra.mxu0 %v292
        %322 = vmatpush.msra.mxu0 %v291
        %323 = vmatpush.msra.mxu0 %v290
        %324 = vmatmul.f32.gmra.mxu0 %v288
        %v325 = vpop.f32.mrf.mxu0
        %v326 = vadd.f32 %v307, %v325
        %327 = vdwg.mxu0
        %vm328 = vcmask 15360
        %329 = vst.msk [vmem:[%s182] sm:$0xff] %vm328, %v326
        %p330 = scmp.lt.s32.totalorder %s15, 1
        %s331 = scalar_select %p330, %s15, 1
        %s332 = smul.addr %s331, 8
        %s333 = scalar_lea.vmem %s3, %s332
        // Predicated region
        $region37: #{odefunc_forward.1} parent=31 // pred_check
          %p334 = pneg %p101
        $region38: #{odefunc_forward.1} parent=31 // pred_check_branch
          %336 = sbr.rel (%p334) target = $region40
        $region39: #{odefunc_forward.1} parent=31 // pred_region
          _
        $region40: #{odefunc_forward.1} parent=31 // pred_fallthru
          _
      $region32: #{odefunc_forward.1} parent=5 // pred_fallthru
        _
      %p337 = scmp.le.s32.totalorder 2, %s10
      // Predicated region
      $region41: #{odefunc_forward.1} parent=5 // pred_check
        %p338 = pneg %p337
      $region42: #{odefunc_forward.1} parent=5 // pred_check_branch
        %340 = sbr.rel (%p338) target = $region44
      $region43: #{odefunc_forward.1} parent=5 // pred_region
        %s341 = ssub.s32 %s10, 2
        // Predicated region
        $region45: #{odefunc_forward.1} parent=43 // pred_check
          %p342 = pneg %p107
        $region46: #{odefunc_forward.1} parent=43 // pred_check_branch
          %344 = sbr.rel (%p342) target = $region48
        $region47: #{odefunc_forward.1} parent=43 // pred_region
          %p345 = scmp.lt.s32.totalorder %s16, 1
          %s346 = scalar_select %p345, %s16, 1
          %s347 = smul.addr %s346, 8
          %s348 = scalar_lea.vmem %s3, %s347
        $region48: #{odefunc_forward.1} parent=43 // pred_fallthru
          _
      $region44: #{odefunc_forward.1} parent=5 // pred_fallthru
        _
    $region6: #{odefunc_forward.1} parent=1 // loop_footer
      %s14 = sadd.s32 1, %s10
    $region7: #{odefunc_forward.1} parent=1 // loop_footer_branch
      %9 = sbr.rel target = $region3
    $region8: #{odefunc_forward.1} parent=1 // loop_exit
      _
    %349 = vsyncpa [#allocation3], 1
    %s350 = scalar_lea.sflag [#allocation3], 1
    %351 = vsyncpa %s350, 1

</llo_original>
